<compile_context>
chip_gen: v7x
topology: tpu7x:2x2x1
jax: 0.10.0
libtpu: 0.0.40
codegen_flags: <defaults>
</compile_context>

<pallas_src>
import jax
import jax.numpy as jnp
from jax.experimental import pallas as pl
from jax.experimental.pallas import tpu as pltpu

RATIO = 1.5                      # module default `ratio`
_R2 = RATIO * RATIO
_INV_R2 = 1.0 / _R2


def _awl_kernel(v_ref, o_ref):
    # v_ref: (3, 1) f32 in VMEM, rows = [p, x0, x1] (single DMA for all inputs)
    # o_ref: (1, 1) f32 in VMEM
    p = v_ref[0:1, :]            # (1, 1)
    x0 = v_ref[1:2, :]           # (1, 1)
    x1 = v_ref[2:3, :]           # (1, 1)

    p2 = p * p                   # p^2
    pr2 = p2 * _R2               # (p*ratio)^2  (no second squaring chain)

    # One EUP reciprocal instead of two f32 divides; one Newton-Raphson step
    # (inv <- inv*(2 - p2*inv)) restores ~full f32 accuracy.
    inv = pl.reciprocal(p2, approx=True)
    inv = inv * (2.0 - p2 * inv)

    # 0.5/p^2 * x0 + 0.5/(p^2 r^2) * x1 == 0.5*inv*(x0 + x1/r^2)
    weighted = 0.5 * inv * (x0 + _INV_R2 * x1)

    # log(1+p^2) + log(1+pr^2) fused into a single EUP log.
    reg = jnp.log((1.0 + p2) * (1.0 + pr2))

    o_ref[...] = weighted + reg


def _forward_pallas(params: jax.Array, x0: jax.Array, x1: jax.Array) -> jax.Array:
    p = jnp.asarray(params, jnp.float32).reshape(-1)[:1]
    a = jnp.asarray(x0, jnp.float32).reshape(-1)[:1]
    b = jnp.asarray(x1, jnp.float32).reshape(-1)[:1]
    packed = jnp.concatenate([p, a, b]).reshape(3, 1)   # single input tile

    vmem = pl.BlockSpec(memory_space=pltpu.MemorySpace.VMEM)
    out = pl.pallas_call(
        _awl_kernel,
        out_shape=jax.ShapeDtypeStruct((1, 1), jnp.float32),
        in_specs=[vmem],
        out_specs=vmem,
    )(packed)
    return out[0, 0]


@jax.custom_vjp
def automatic_weighted_one_loss(params: jax.Array,
                                x0: jax.Array,
                                x1: jax.Array) -> jax.Array:
    """Pallas forward of AutomaticWeightedOneLoss (scalar f32 loss)."""
    return _forward_pallas(params, x0, x1)


def _awl_fwd(params, x0, x1):
    out = _forward_pallas(params, x0, x1)
    return out, (params, x0, x1)


def _awl_bwd(res, g):
    # Analytic backward in plain jnp (trivial scalar math; no kernel needed).
    params, x0, x1 = res
    p = jnp.asarray(params, jnp.float32).reshape(-1)[0]
    x0s = jnp.asarray(x0, jnp.float32).reshape(-1)[0]
    x1s = jnp.asarray(x1, jnp.float32).reshape(-1)[0]
    p2 = p * p

    dp = (-x0s / (p2 * p) + 2.0 * p / (1.0 + p2)
          - x1s / (_R2 * p2 * p) + 2.0 * _R2 * p / (1.0 + _R2 * p2))

    params_arr = jnp.asarray(params)
    d_params = jnp.zeros_like(params_arr).at[0].set(
        (g * dp).astype(params_arr.dtype))
    d_x0 = jnp.broadcast_to(g * 0.5 / p2, jnp.shape(x0)).astype(
        jnp.asarray(x0).dtype)
    d_x1 = jnp.broadcast_to(g * 0.5 / (_R2 * p2), jnp.shape(x1)).astype(
        jnp.asarray(x1).dtype)
    return d_params, d_x0, d_x1


automatic_weighted_one_loss.defvjp(_awl_fwd, _awl_bwd)


def _reference(params, x0, x1):
    p = params[0]
    return (0.5 / p ** 2 * x0 + jnp.log(1.0 + p ** 2)
            + 0.5 / (p * RATIO) ** 2 * x1 + jnp.log(1.0 + (p * RATIO) ** 2))


if __name__ == "__main__":
    # Deterministic parameter init matching the module: torch.ones(1)
    params = jnp.ones((1,), dtype=jnp.float32)

    # Deterministic example "losses" (positive scalars), as the module expects.
    key = jax.random.PRNGKey(0)
    k0, k1 = jax.random.split(key)
    x0 = jax.random.uniform(k0, (), dtype=jnp.float32, minval=0.1, maxval=2.0)
    x1 = jax.random.uniform(k1, (), dtype=jnp.float32, minval=0.1, maxval=2.0)

    # Forward (Pallas kernel).
    out = automatic_weighted_one_loss(params, x0, x1)
    out = jax.block_until_ready(out)
    ref = _reference(params, x0, x1)
    assert jnp.allclose(out, ref, rtol=1e-5, atol=1e-6), (out, ref)

    # Backward (analytic custom_vjp) vs. autodiff of the plain-jnp reference.
    g_k = jax.grad(automatic_weighted_one_loss, argnums=(0, 1, 2))(params, x0, x1)
    g_r = jax.grad(_reference, argnums=(0, 1, 2))(params, x0, x1)
    g_k = jax.block_until_ready(g_k)
    for gk, gr in zip(g_k, g_r):
        assert jnp.allclose(gk, gr, rtol=1e-4, atol=1e-5), (gk, gr)

    print("KERNEL_OK")
</pallas_src>

<mosaic_0001>
module attributes {stable_mosaic.version = 11 : i64} {
  func.func @_awl_kernel(%arg0: memref<3x1xf32, #tpu.memory_space<vmem>>, %arg1: memref<1x1xf32, #tpu.memory_space<vmem>>) attributes {dimension_semantics = [], scalar_prefetch = 0 : i64, scratch_operands = 0 : i64, tpu.core_type = #tpu.core_type<tc>} {
    %c0 = arith.constant 0 : index
    %c0_0 = arith.constant 0 : index
    %0 = vector.load %arg0[%c0, %c0_0] : memref<3x1xf32, #tpu.memory_space<vmem>>, vector<1x1xf32>
    %c1 = arith.constant 1 : index
    %c0_1 = arith.constant 0 : index
    %1 = vector.load %arg0[%c1, %c0_1] : memref<3x1xf32, #tpu.memory_space<vmem>>, vector<1x1xf32>
    %c2 = arith.constant 2 : index
    %c0_2 = arith.constant 0 : index
    %2 = vector.load %arg0[%c2, %c0_2] : memref<3x1xf32, #tpu.memory_space<vmem>>, vector<1x1xf32>
    %3 = arith.mulf %0, %0 : vector<1x1xf32>
    %cst = arith.constant 2.250000e+00 : f32
    %4 = vector.broadcast %cst : f32 to vector<1x1xf32>
    %5 = arith.mulf %3, %4 : vector<1x1xf32>
    %6 = tpu.reciprocal %3 {approx = true} : vector<1x1xf32> -> vector<1x1xf32>
    %7 = arith.mulf %3, %6 : vector<1x1xf32>
    %cst_3 = arith.constant 2.000000e+00 : f32
    %8 = vector.broadcast %cst_3 : f32 to vector<1x1xf32>
    %9 = arith.subf %8, %7 : vector<1x1xf32>
    %10 = arith.mulf %6, %9 : vector<1x1xf32>
    %cst_4 = arith.constant 5.000000e-01 : f32
    %11 = vector.broadcast %cst_4 : f32 to vector<1x1xf32>
    %12 = arith.mulf %11, %10 : vector<1x1xf32>
    %cst_5 = arith.constant 0.444444448 : f32
    %13 = vector.broadcast %cst_5 : f32 to vector<1x1xf32>
    %14 = arith.mulf %13, %2 : vector<1x1xf32>
    %15 = arith.addf %1, %14 : vector<1x1xf32>
    %16 = arith.mulf %12, %15 : vector<1x1xf32>
    %cst_6 = arith.constant 1.000000e+00 : f32
    %17 = vector.broadcast %cst_6 : f32 to vector<1x1xf32>
    %18 = arith.addf %17, %3 : vector<1x1xf32>
    %cst_7 = arith.constant 1.000000e+00 : f32
    %19 = vector.broadcast %cst_7 : f32 to vector<1x1xf32>
    %20 = arith.addf %19, %5 : vector<1x1xf32>
    %21 = arith.mulf %18, %20 : vector<1x1xf32>
    %22 = math.log %21 : vector<1x1xf32>
    %23 = arith.addf %16, %22 : vector<1x1xf32>
    %c0_8 = arith.constant 0 : index
    %c0_9 = arith.constant 0 : index
    %24 = vector.load %arg1[%c0_8, %c0_9] : memref<1x1xf32, #tpu.memory_space<vmem>>, vector<1x1xf32>
    tpu.vector_store %arg1[%c0_8, %c0_9], %23 {strides = array<i32>} : memref<1x1xf32, #tpu.memory_space<vmem>>, vector<1x1xf32>,
    return
  }
}

</mosaic_0001>

<llo_original>
// kernel: tpu_custom_call.1
$region0: #{tpu_custom_call.1}
  #allocation0 [shape = 'u32[]', space=smem, size = 0x4, offset = 0x4, fixed_abs, tag = 'smem constant byte address 0x4 - core index']
  #allocation1 [shape = 'u32[144,128]{1,0:T(1,128)}', space=vmem, size = 0x12000, scoped, tag = 'internal scratch']
  %s0 = inlined_call_operand.vmem [shape: f32[3,1], index: 0, kind: input, shape index: {}]
  %s1 = inlined_call_operand.hbm [shape: f32[1,1], index: 1, kind: output, shape index: {}]
  %s2 = sld [smem:[#allocation0]]
  $region14: #{tpu_custom_call.1} parent=0
    _
  %s4 = ssub.s32 1, %s2
  %s5 = scalar_select 0, %s4, %s2
  $region1: #{tpu_custom_call.1} parent=0
    #allocation2 [shape = 'u8[512]{0}', space=vmem, size = 0x400, scoped, tag = 'output window, operand 0, single buffered']
    #allocation3 [shape = 's32[1]{0}', space=sflag, size = 0x4, scoped, tag = 'scoped memory for tpu_custom_call.1']
    %6 = vsyncpa [#allocation3], 0
    // Predicated region
    $region2: #{tpu_custom_call.1} parent=1 // pred_check
      _
    $region3: #{tpu_custom_call.1} parent=1 // pred_check_branch
      %8 = sbr.rel (0) target = $region5
    $region4: #{tpu_custom_call.1} parent=1 // pred_region
      _
    $region5: #{tpu_custom_call.1} parent=1 // pred_fallthru
      _
    %v9 = vld [vmem:[%s0] sm:$0x1]
    %v10 = vld [vmem:[%s0 + $0x1] sm:$0x1]
    %v11 = vld [vmem:[%s0 + $0x2] sm:$0x1]
    %v12 = vmul.f32 %v9, %v9
    %v13 = vmul.f32 %v12, 2.25
    %v14 = vrcp.pop %v12
    %v15 = vmul.f32 %v12, %v14
    %v16 = vsub.f32 2.0, %v15
    %v17 = vmul.f32 %v14, %v16
    %v18 = vmul.f32 %v17, 0.5
    %v19 = vmul.f32 %v11, 0.44444445
    %v20 = vadd.f32 %v10, %v19
    %v21 = vmul.f32 %v18, %v20
    %v22 = vadd.f32 %v12, 1.0
    %v23 = vadd.f32 %v13, 1.0
    %v24 = vmul.f32 %v22, %v23
    %v25 = vlog2.pop %v24
    %v26 = vmul.f32 %v25, 0.6931472
    %v27 = vadd.f32 %v21, %v26
    %vm28 = vcmask 0
    %29 = vst.msk [vmem:[#allocation2] sm:$0x1] %vm28, %v27
    // Predicated region
    $region6: #{tpu_custom_call.1} parent=1 // pred_check
      _
    $region7: #{tpu_custom_call.1} parent=1 // pred_check_branch
      %31 = sbr.rel (0) target = $region9
    $region8: #{tpu_custom_call.1} parent=1 // pred_region
      %s33 = ssub.s32 16, 16
      %34 = vsyncadd [#allocation3], %s33
      %s36 = sshll.u32 [#allocation2], 4
      %s37 = int_to_ptr.vmem [resolvable:$true] %s36
      %39 = dma.vmem_to_hbm [thread:$0]  %s37, 16, %s1, [#allocation3]
    $region9: #{tpu_custom_call.1} parent=1 // pred_fallthru
      _
    // Predicated region
    $region10: #{tpu_custom_call.1} parent=1 // pred_check
      _
    $region11: #{tpu_custom_call.1} parent=1 // pred_check_branch
      %41 = sbr.rel (0) target = $region13
    $region12: #{tpu_custom_call.1} parent=1 // pred_region
      %42 = dma.done [#allocation3], 16
    $region13: #{tpu_custom_call.1} parent=1 // pred_fallthru
      _
    %43 = vsyncpa [#allocation3], 1

</llo_original>
